<compile_context>
chip_gen: v7x
topology: tpu7x:2x2x1
jax: 0.10.0
libtpu: 0.0.40
codegen_flags: <defaults>
</compile_context>

<pallas_src>
import jax
import jax.numpy as jnp
from jax import lax
from jax.experimental import pallas as pl
from jax.experimental.pallas import tpu as pltpu


def _grouped_proj_kernel(x_ref, wq_ref, scale_ref, zero_ref, proj_ref, b_ref, y_ref):
    # x_ref    : (bt, in)            activation tile (bf16)
    # wq_ref   : (gpb, gs, in/2)     packed 4-bit weights (int8: lo|hi<<4)
    # scale_ref: (gpb, gs, 1)        per-row dequant scale (f32)
    # zero_ref : (gpb, gs, 1)        per-row dequant zero  (f32)
    # proj_ref : (gpb, gs, gs)       projection tiles (bf16)
    # b_ref    : (1, gpb*gs)         bias slab (f32)
    # y_ref    : (bt, gpb*gs)        output slab
    gpb, gs, in_half = wq_ref.shape
    bt, in_features = x_ref.shape
    cdt = x_ref.dtype                      # operand dtype for MXU (bf16); acc is f32

    x = x_ref[...]
    x_lo = x[:, :in_half]                  # matches low-nibble columns [0, in/2)
    x_hi = x[:, in_half:]                  # matches high-nibble columns [in/2, in)

    # Static (trace-time) choice: the reassociated order is cheaper iff bt < in.
    #   original:    2*gs*in*(gs+bt) FLOPs / group
    #   reassociated 2*bt*gs*(in+gs) FLOPs / group
    reassociate = bt < in_features

    for k in range(gpb):                   # static unroll over groups in this block
        # ---- fused HQQ dequant: unpack nibbles, (q - zero) * scale, cast bf16 ----
        q = wq_ref[k].astype(jnp.int32)                       # (gs, in/2)
        scale = scale_ref[k]                                   # (gs, 1) f32
        zero = zero_ref[k]                                     # (gs, 1) f32
        w_lo = (((q & 0xF).astype(jnp.float32) - zero) * scale).astype(cdt)
        w_hi = ((((q >> 4) & 0xF).astype(jnp.float32) - zero) * scale).astype(cdt)
        p = proj_ref[k]                                        # (gs, gs) bf16

        if reassociate:
            # t = x @ W_k.T  (split over the packed halves), then y = t @ proj_k.T
            t = lax.dot_general(x_lo, w_lo, (((1,), (1,)), ((), ())),
                                preferred_element_type=jnp.float32)
            t = t + lax.dot_general(x_hi, w_hi, (((1,), (1,)), ((), ())),
                                    preferred_element_type=jnp.float32)
            y = lax.dot_general(t.astype(cdt), p, (((1,), (1,)), ((), ())),
                                preferred_element_type=jnp.float32)
        else:
            # Original order (matches torch cast placement): W_new = proj @ W, cast,
            # then x @ W_new.T -- still split over the two packed halves.
            w_new_lo = jnp.dot(p, w_lo, preferred_element_type=jnp.float32).astype(cdt)
            w_new_hi = jnp.dot(p, w_hi, preferred_element_type=jnp.float32).astype(cdt)
            y = lax.dot_general(x_lo, w_new_lo, (((1,), (1,)), ((), ())),
                                preferred_element_type=jnp.float32)
            y = y + lax.dot_general(x_hi, w_new_hi, (((1,), (1,)), ((), ())),
                                    preferred_element_type=jnp.float32)

        y = y + b_ref[:, k * gs:(k + 1) * gs].astype(jnp.float32)
        y_ref[:, k * gs:(k + 1) * gs] = y.astype(y_ref.dtype)


def hqq_grouped_proj_forward(x, proj, w_q_packed, scale, zero, bias,
                             *, groups_per_block=None, block_b=None):
    """Fused HQQ-dequant grouped-projection linear.

    x          : (B, in)                     activations (bf16 recommended)
    proj       : (proj_num, gs, gs)          projection parameter
    w_q_packed : (proj_num, gs, in//2) int8  two 4-bit weights per byte
                                             (column j in low nibble, j+in//2 high)
    scale,zero : (proj_num, gs, 1)           per-output-row dequant meta
    bias       : (out_features,)
    """
    B, in_features = x.shape
    proj_num, gs, gs2 = proj.shape
    assert gs == gs2
    out_features = proj_num * gs
    in_half = in_features // 2
    assert in_features == 2 * in_half, "in_features must be even (4-bit packing)"
    assert w_q_packed.shape == (proj_num, gs, in_half)
    assert scale.shape == (proj_num, gs, 1) and zero.shape == (proj_num, gs, 1)

    if groups_per_block is None:
        groups_per_block = 2 if proj_num % 2 == 0 else 1
    gpb = groups_per_block
    assert proj_num % gpb == 0

    if block_b is None:
        block_b = B
        for cand in (256, 128, 64, 32, 16, 8):
            if B % cand == 0:
                block_b = cand
                break
    bt = block_b
    assert B % bt == 0

    proj_c = proj.astype(x.dtype)                        # bf16 MXU operands
    bias_2d = bias.reshape(1, out_features).astype(jnp.float32)
    scale_f = scale.astype(jnp.float32)
    zero_f = zero.astype(jnp.float32)

    grid = (B // bt, proj_num // gpb)

    grid_spec = pltpu.PrefetchScalarGridSpec(
        num_scalar_prefetch=0,
        grid=grid,
        in_specs=[
            pl.BlockSpec((bt, in_features), lambda b, g: (b, 0)),        # x tile
            pl.BlockSpec((gpb, gs, in_half), lambda b, g: (g, 0, 0)),    # packed W
            pl.BlockSpec((gpb, gs, 1), lambda b, g: (g, 0, 0)),          # scale
            pl.BlockSpec((gpb, gs, 1), lambda b, g: (g, 0, 0)),          # zero
            pl.BlockSpec((gpb, gs, gs), lambda b, g: (g, 0, 0)),         # proj
            pl.BlockSpec((1, gpb * gs), lambda b, g: (0, g)),            # bias slab
        ],
        out_specs=pl.BlockSpec((bt, gpb * gs), lambda b, g: (b, g)),     # y slab
    )

    return pl.pallas_call(
        _grouped_proj_kernel,
        out_shape=jax.ShapeDtypeStruct((B, out_features), x.dtype),
        grid_spec=grid_spec,
        compiler_params=pltpu.CompilerParams(
            dimension_semantics=("parallel", "parallel")),
    )(x, w_q_packed, scale_f, zero_f, proj_c, bias_2d)


# ----------------------------------------------------------------------------
# Synthetic HQQ-style quantization (calibration-time, not part of forward) and
# a pure-JAX reference that follows the torch forward exactly on the
# dequantized weight.
# ----------------------------------------------------------------------------
def quantize_4bit_per_row(w, proj_num, gs):
    out_features, in_features = w.shape
    in_half = in_features // 2
    w_min = w.min(axis=1, keepdims=True)
    w_max = w.max(axis=1, keepdims=True)
    scale = jnp.maximum((w_max - w_min) / 15.0, 1e-8)
    zero = -w_min / scale
    q = jnp.clip(jnp.round(w / scale + zero), 0.0, 15.0).astype(jnp.int32)
    w_deq = (q.astype(jnp.float32) - zero) * scale          # what dequantize() returns
    qg = q.reshape(proj_num, gs, in_features)
    lo = qg[..., :in_half]
    hi = qg[..., in_half:]
    packed_u8 = (lo | (hi << 4)).astype(jnp.uint8)
    packed_i8 = jax.lax.bitcast_convert_type(packed_u8, jnp.int8)
    scale_g = scale.reshape(proj_num, gs, 1)
    zero_g = zero.reshape(proj_num, gs, 1)
    return packed_i8, scale_g, zero_g, w_deq


def reference_forward(x, proj, w_deq, bias):
    proj_num, gs, _ = proj.shape
    out_features, in_features = w_deq.shape
    wg = w_deq.reshape(proj_num, gs, in_features).astype(jnp.float32)
    w_new = jnp.einsum("gij,gjk->gik", proj.astype(jnp.float32), wg,
                       precision=jax.lax.Precision.HIGHEST)
    w_new = w_new.astype(x.dtype).reshape(out_features, in_features)
    y = jnp.dot(x.astype(jnp.float32), w_new.T.astype(jnp.float32),
                precision=jax.lax.Precision.HIGHEST) + bias.astype(jnp.float32)
    return y.astype(x.dtype)


if __name__ == "__main__":
    def run_case(key, B, in_features, proj_num, gs, x_dtype=jnp.bfloat16):
        out_features = proj_num * gs
        k_x, k_w, k_b, k_p = jax.random.split(key, 4)
        x = jax.random.normal(k_x, (B, in_features), dtype=jnp.float32).astype(x_dtype)
        w = jax.random.normal(k_w, (out_features, in_features), dtype=jnp.float32) * 0.05
        bias = jax.random.normal(k_b, (out_features,), dtype=jnp.float32) * 0.1
        # Module __init__: proj = stacked identities (train_dtype=float), slightly
        # perturbed so the projection matmul is non-trivial.
        proj = (jnp.stack([jnp.eye(gs, dtype=jnp.float32)] * proj_num)
                + 0.01 * jax.random.normal(k_p, (proj_num, gs, gs), dtype=jnp.float32))

        wq, scale, zero, w_deq = quantize_4bit_per_row(w, proj_num, gs)

        y = hqq_grouped_proj_forward(x, proj, wq, scale, zero, bias)
        y = jax.block_until_ready(y)

        y_ref = reference_forward(x, proj, w_deq, bias)
        assert y.shape == (B, out_features)
        ok = jnp.allclose(y.astype(jnp.float32), y_ref.astype(jnp.float32),
                          atol=0.1, rtol=0.05)
        assert bool(ok), "kernel output mismatch vs reference"
        return y

    key = jax.random.PRNGKey(0)
    k1, k2 = jax.random.split(key)
    # Small-batch case: exercises the reassociated (x @ W.T) @ proj.T path.
    run_case(k1, B=8, in_features=256, proj_num=2, gs=128)
    # Larger-batch case: exercises batch tiling, multi-step grid and the
    # original proj@W-first path (bt >= in_features).
    run_case(k2, B=256, in_features=256, proj_num=4, gs=128)

    print("KERNEL_OK")
</pallas_src>

<mosaic_0001>
module attributes {stable_mosaic.version = 11 : i64} {
  func.func @_grouped_proj_kernel(%arg0: i32, %arg1: i32, %arg2: memref<8x256xbf16, #tpu.memory_space<vmem>>, %arg3: memref<2x128x128xi8, #tpu.memory_space<vmem>>, %arg4: memref<2x128x1xf32, #tpu.memory_space<vmem>>, %arg5: memref<2x128x1xf32, #tpu.memory_space<vmem>>, %arg6: memref<2x128x128xbf16, #tpu.memory_space<vmem>>, %arg7: memref<1x256xf32, #tpu.memory_space<vmem>>, %arg8: memref<8x256xbf16, #tpu.memory_space<vmem>>) attributes {dimension_semantics = [#tpu.dimension_semantics<parallel>, #tpu.dimension_semantics<parallel>], iteration_bounds = array<i64: 1, 1>, scalar_prefetch = 0 : i64, scratch_operands = 0 : i64, tpu.core_type = #tpu.core_type<tc>, window_params = [{transform_indices = @transform_0, window_bounds = array<i64: 8, 256>}, {transform_indices = @transform_1, window_bounds = array<i64: 2, 128, 128>}, {transform_indices = @transform_2, window_bounds = array<i64: 2, 128, 1>}, {transform_indices = @transform_3, window_bounds = array<i64: 2, 128, 1>}, {transform_indices = @transform_4, window_bounds = array<i64: 2, 128, 128>}, {transform_indices = @transform_5, window_bounds = array<i64: 1, 256>}, {transform_indices = @transform_6, window_bounds = array<i64: 8, 256>}]} {
    %c0 = arith.constant 0 : index
    %c0_0 = arith.constant 0 : index
    %0 = vector.load %arg2[%c0, %c0_0] : memref<8x256xbf16, #tpu.memory_space<vmem>>, vector<8x256xbf16>
    %1 = vector.extract_strided_slice %0 {offsets = [0, 0], sizes = [8, 128], strides = [1, 1]} : vector<8x256xbf16> to vector<8x128xbf16>
    %2 = vector.extract_strided_slice %0 {offsets = [0, 128], sizes = [8, 128], strides = [1, 1]} : vector<8x256xbf16> to vector<8x128xbf16>
    %c0_1 = arith.constant 0 : index
    %c0_2 = arith.constant 0 : index
    %c0_3 = arith.constant 0 : index
    %3 = vector.load %arg3[%c0_1, %c0_2, %c0_3] : memref<2x128x128xi8, #tpu.memory_space<vmem>>, vector<1x128x128xi8>
    %4 = vector.shape_cast %3 : vector<1x128x128xi8> to vector<128x128xi8>
    %5 = arith.extsi %4 : vector<128x128xi8> to vector<128x128xi32>
    %c0_4 = arith.constant 0 : index
    %c0_5 = arith.constant 0 : index
    %c0_6 = arith.constant 0 : index
    %6 = vector.load %arg4[%c0_4, %c0_5, %c0_6] : memref<2x128x1xf32, #tpu.memory_space<vmem>>, vector<1x128x1xf32>
    %7 = vector.shape_cast %6 : vector<1x128x1xf32> to vector<128x1xf32>
    %c0_7 = arith.constant 0 : index
    %c0_8 = arith.constant 0 : index
    %c0_9 = arith.constant 0 : index
    %8 = vector.load %arg5[%c0_7, %c0_8, %c0_9] : memref<2x128x1xf32, #tpu.memory_space<vmem>>, vector<1x128x1xf32>
    %9 = vector.shape_cast %8 : vector<1x128x1xf32> to vector<128x1xf32>
    %c15_i32 = arith.constant 15 : i32
    %10 = vector.broadcast %c15_i32 : i32 to vector<128x128xi32>
    %11 = arith.andi %5, %10 : vector<128x128xi32>
    %12 = arith.sitofp %11 : vector<128x128xi32> to vector<128x128xf32>
    %13 = vector.broadcast %9 : vector<128x1xf32> to vector<128x128xf32>
    %14 = arith.subf %12, %13 : vector<128x128xf32>
    %15 = vector.broadcast %7 : vector<128x1xf32> to vector<128x128xf32>
    %16 = arith.mulf %14, %15 : vector<128x128xf32>
    %17 = arith.truncf %16 : vector<128x128xf32> to vector<128x128xbf16>
    %c4_i32 = arith.constant 4 : i32
    %18 = vector.broadcast %c4_i32 : i32 to vector<128x128xi32>
    %19 = arith.shrsi %5, %18 : vector<128x128xi32>
    %c15_i32_10 = arith.constant 15 : i32
    %20 = vector.broadcast %c15_i32_10 : i32 to vector<128x128xi32>
    %21 = arith.andi %19, %20 : vector<128x128xi32>
    %22 = arith.sitofp %21 : vector<128x128xi32> to vector<128x128xf32>
    %23 = vector.broadcast %9 : vector<128x1xf32> to vector<128x128xf32>
    %24 = arith.subf %22, %23 : vector<128x128xf32>
    %25 = vector.broadcast %7 : vector<128x1xf32> to vector<128x128xf32>
    %26 = arith.mulf %24, %25 : vector<128x128xf32>
    %27 = arith.truncf %26 : vector<128x128xf32> to vector<128x128xbf16>
    %c0_11 = arith.constant 0 : index
    %c0_12 = arith.constant 0 : index
    %c0_13 = arith.constant 0 : index
    %28 = vector.load %arg6[%c0_11, %c0_12, %c0_13] : memref<2x128x128xbf16, #tpu.memory_space<vmem>>, vector<1x128x128xbf16>
    %29 = vector.shape_cast %28 : vector<1x128x128xbf16> to vector<128x128xbf16>
    %cst = arith.constant dense<0.000000e+00> : vector<8x128xf32>
    %30 = tpu.matmul %1, %17, %cst {dimension_numbers = #tpu.dot_dimension_numbers<[1], [1], [0], [0], [0, 0, 1, 0], [], []>} : vector<8x128xbf16>, vector<128x128xbf16>, vector<8x128xf32> -> vector<8x128xf32>
    %cst_14 = arith.constant dense<0.000000e+00> : vector<8x128xf32>
    %31 = tpu.matmul %2, %27, %cst_14 {dimension_numbers = #tpu.dot_dimension_numbers<[1], [1], [0], [0], [0, 0, 1, 0], [], []>} : vector<8x128xbf16>, vector<128x128xbf16>, vector<8x128xf32> -> vector<8x128xf32>
    %32 = arith.addf %30, %31 : vector<8x128xf32>
    %33 = arith.truncf %32 : vector<8x128xf32> to vector<8x128xbf16>
    %cst_15 = arith.constant dense<0.000000e+00> : vector<8x128xf32>
    %34 = tpu.matmul %33, %29, %cst_15 {dimension_numbers = #tpu.dot_dimension_numbers<[1], [1], [0], [0], [0, 0, 1, 0], [], []>} : vector<8x128xbf16>, vector<128x128xbf16>, vector<8x128xf32> -> vector<8x128xf32>
    %c0_16 = arith.constant 0 : index
    %c0_17 = arith.constant 0 : index
    %35 = vector.load %arg7[%c0_16, %c0_17] : memref<1x256xf32, #tpu.memory_space<vmem>>, vector<1x128xf32>
    %36 = vector.broadcast %35 : vector<1x128xf32> to vector<8x128xf32>
    %37 = arith.addf %34, %36 : vector<8x128xf32>
    %38 = arith.truncf %37 : vector<8x128xf32> to vector<8x128xbf16>
    %c0_18 = arith.constant 0 : index
    %c0_19 = arith.constant 0 : index
    %39 = vector.load %arg8[%c0_18, %c0_19] : memref<8x256xbf16, #tpu.memory_space<vmem>>, vector<8x128xbf16>
    tpu.vector_store %arg8[%c0_18, %c0_19], %38 {strides = array<i32>} : memref<8x256xbf16, #tpu.memory_space<vmem>>, vector<8x128xbf16>,
    %c1 = arith.constant 1 : index
    %c0_20 = arith.constant 0 : index
    %c0_21 = arith.constant 0 : index
    %40 = vector.load %arg3[%c1, %c0_20, %c0_21] : memref<2x128x128xi8, #tpu.memory_space<vmem>>, vector<1x128x128xi8>
    %41 = vector.shape_cast %40 : vector<1x128x128xi8> to vector<128x128xi8>
    %42 = arith.extsi %41 : vector<128x128xi8> to vector<128x128xi32>
    %c1_22 = arith.constant 1 : index
    %c0_23 = arith.constant 0 : index
    %c0_24 = arith.constant 0 : index
    %43 = vector.load %arg4[%c1_22, %c0_23, %c0_24] : memref<2x128x1xf32, #tpu.memory_space<vmem>>, vector<1x128x1xf32>
    %44 = vector.shape_cast %43 : vector<1x128x1xf32> to vector<128x1xf32>
    %c1_25 = arith.constant 1 : index
    %c0_26 = arith.constant 0 : index
    %c0_27 = arith.constant 0 : index
    %45 = vector.load %arg5[%c1_25, %c0_26, %c0_27] : memref<2x128x1xf32, #tpu.memory_space<vmem>>, vector<1x128x1xf32>
    %46 = vector.shape_cast %45 : vector<1x128x1xf32> to vector<128x1xf32>
    %c15_i32_28 = arith.constant 15 : i32
    %47 = vector.broadcast %c15_i32_28 : i32 to vector<128x128xi32>
    %48 = arith.andi %42, %47 : vector<128x128xi32>
    %49 = arith.sitofp %48 : vector<128x128xi32> to vector<128x128xf32>
    %50 = vector.broadcast %46 : vector<128x1xf32> to vector<128x128xf32>
    %51 = arith.subf %49, %50 : vector<128x128xf32>
    %52 = vector.broadcast %44 : vector<128x1xf32> to vector<128x128xf32>
    %53 = arith.mulf %51, %52 : vector<128x128xf32>
    %54 = arith.truncf %53 : vector<128x128xf32> to vector<128x128xbf16>
    %c4_i32_29 = arith.constant 4 : i32
    %55 = vector.broadcast %c4_i32_29 : i32 to vector<128x128xi32>
    %56 = arith.shrsi %42, %55 : vector<128x128xi32>
    %c15_i32_30 = arith.constant 15 : i32
    %57 = vector.broadcast %c15_i32_30 : i32 to vector<128x128xi32>
    %58 = arith.andi %56, %57 : vector<128x128xi32>
    %59 = arith.sitofp %58 : vector<128x128xi32> to vector<128x128xf32>
    %60 = vector.broadcast %46 : vector<128x1xf32> to vector<128x128xf32>
    %61 = arith.subf %59, %60 : vector<128x128xf32>
    %62 = vector.broadcast %44 : vector<128x1xf32> to vector<128x128xf32>
    %63 = arith.mulf %61, %62 : vector<128x128xf32>
    %64 = arith.truncf %63 : vector<128x128xf32> to vector<128x128xbf16>
    %c1_31 = arith.constant 1 : index
    %c0_32 = arith.constant 0 : index
    %c0_33 = arith.constant 0 : index
    %65 = vector.load %arg6[%c1_31, %c0_32, %c0_33] : memref<2x128x128xbf16, #tpu.memory_space<vmem>>, vector<1x128x128xbf16>
    %66 = vector.shape_cast %65 : vector<1x128x128xbf16> to vector<128x128xbf16>
    %cst_34 = arith.constant dense<0.000000e+00> : vector<8x128xf32>
    %67 = tpu.matmul %1, %54, %cst_34 {dimension_numbers = #tpu.dot_dimension_numbers<[1], [1], [0], [0], [0, 0, 1, 0], [], []>} : vector<8x128xbf16>, vector<128x128xbf16>, vector<8x128xf32> -> vector<8x128xf32>
    %cst_35 = arith.constant dense<0.000000e+00> : vector<8x128xf32>
    %68 = tpu.matmul %2, %64, %cst_35 {dimension_numbers = #tpu.dot_dimension_numbers<[1], [1], [0], [0], [0, 0, 1, 0], [], []>} : vector<8x128xbf16>, vector<128x128xbf16>, vector<8x128xf32> -> vector<8x128xf32>
    %69 = arith.addf %67, %68 : vector<8x128xf32>
    %70 = arith.truncf %69 : vector<8x128xf32> to vector<8x128xbf16>
    %cst_36 = arith.constant dense<0.000000e+00> : vector<8x128xf32>
    %71 = tpu.matmul %70, %66, %cst_36 {dimension_numbers = #tpu.dot_dimension_numbers<[1], [1], [0], [0], [0, 0, 1, 0], [], []>} : vector<8x128xbf16>, vector<128x128xbf16>, vector<8x128xf32> -> vector<8x128xf32>
    %c0_37 = arith.constant 0 : index
    %c128 = arith.constant 128 : index
    %72 = vector.load %arg7[%c0_37, %c128] : memref<1x256xf32, #tpu.memory_space<vmem>>, vector<1x128xf32>
    %73 = vector.broadcast %72 : vector<1x128xf32> to vector<8x128xf32>
    %74 = arith.addf %71, %73 : vector<8x128xf32>
    %75 = arith.truncf %74 : vector<8x128xf32> to vector<8x128xbf16>
    %c0_38 = arith.constant 0 : index
    %c128_39 = arith.constant 128 : index
    %76 = vector.load %arg8[%c0_38, %c128_39] : memref<8x256xbf16, #tpu.memory_space<vmem>>, vector<8x128xbf16>
    tpu.vector_store %arg8[%c0_38, %c128_39], %75 {strides = array<i32>} : memref<8x256xbf16, #tpu.memory_space<vmem>>, vector<8x128xbf16>,
    return
  }
  func.func @transform_0(%arg0: i32, %arg1: i32) -> (i32, i32) {
    %c0_i32 = arith.constant 0 : i32
    %c0_i32_0 = arith.constant 0 : i32
    return %arg0, %c0_i32 : i32, i32
  }
  func.func @transform_1(%arg0: i32, %arg1: i32) -> (i32, i32, i32) {
    %c0_i32 = arith.constant 0 : i32
    %c0_i32_0 = arith.constant 0 : i32
    %c0_i32_1 = arith.constant 0 : i32
    return %arg1, %c0_i32, %c0_i32_0 : i32, i32, i32
  }
  func.func @transform_2(%arg0: i32, %arg1: i32) -> (i32, i32, i32) {
    %c0_i32 = arith.constant 0 : i32
    %c0_i32_0 = arith.constant 0 : i32
    %c0_i32_1 = arith.constant 0 : i32
    return %arg1, %c0_i32, %c0_i32_0 : i32, i32, i32
  }
  func.func @transform_3(%arg0: i32, %arg1: i32) -> (i32, i32, i32) {
    %c0_i32 = arith.constant 0 : i32
    %c0_i32_0 = arith.constant 0 : i32
    %c0_i32_1 = arith.constant 0 : i32
    return %arg1, %c0_i32, %c0_i32_0 : i32, i32, i32
  }
  func.func @transform_4(%arg0: i32, %arg1: i32) -> (i32, i32, i32) {
    %c0_i32 = arith.constant 0 : i32
    %c0_i32_0 = arith.constant 0 : i32
    %c0_i32_1 = arith.constant 0 : i32
    return %arg1, %c0_i32, %c0_i32_0 : i32, i32, i32
  }
  func.func @transform_5(%arg0: i32, %arg1: i32) -> (i32, i32) {
    %c0_i32 = arith.constant 0 : i32
    %c0_i32_0 = arith.constant 0 : i32
    return %c0_i32, %arg1 : i32, i32
  }
  func.func @transform_6(%arg0: i32, %arg1: i32) -> (i32, i32) {
    %c0_i32 = arith.constant 0 : i32
    return %arg0, %arg1 : i32, i32
  }
}

</mosaic_0001>

<llo_original>
// kernel: tpu_custom_call.1
$region0: #{tpu_custom_call.1}
  #allocation0 [shape = 'u32[]', space=smem, size = 0x4, offset = 0x4, fixed_abs, tag = 'smem constant byte address 0x4 - core index']
  #allocation1 [shape = 'u32[144,128]{1,0:T(1,128)}', space=vmem, size = 0x12000, scoped, tag = 'internal scratch']
  %s0 = inlined_call_operand.vmem [shape: bf16[8,256], index: 0, kind: input, shape index: {}]
  %s1 = inlined_call_operand.vmem [shape: s8[2,128,128], index: 1, kind: input, shape index: {}]
  %s2 = inlined_call_operand.vmem [shape: f32[2,128,1], index: 2, kind: input, shape index: {}]
  %s3 = inlined_call_operand.vmem [shape: f32[2,128,1], index: 3, kind: input, shape index: {}]
  %s4 = inlined_call_operand.vmem [shape: bf16[2,128,128], index: 4, kind: input, shape index: {}]
  %s5 = inlined_call_operand.vmem [shape: f32[1,256], index: 5, kind: input, shape index: {}]
  %s6 = inlined_call_operand.hbm [shape: bf16[8,256], index: 6, kind: output, shape index: {}]
  %s7 = sld [smem:[#allocation0]]
  $region34: #{tpu_custom_call.1} parent=0
    _
  %s9 = ssub.s32 1, %s7
  %s10 = scalar_select 0, %s9, %s7
  $region1: #{tpu_custom_call.1} parent=0
    #allocation2 [shape = 'u8[4096]{0}', space=vmem, size = 0x1000, scoped, tag = 'output window, operand 0, single buffered']
    #allocation3 [shape = 's32[1]{0}', space=sflag, size = 0x4, scoped, tag = 'scoped memory for tpu_custom_call.1']
    %11 = vsyncpa [#allocation3], 0
    // Predicated region
    $region2: #{tpu_custom_call.1} parent=1 // pred_check
      _
    $region3: #{tpu_custom_call.1} parent=1 // pred_check_branch
      %13 = sbr.rel (0) target = $region5
    $region4: #{tpu_custom_call.1} parent=1 // pred_region
      _
    $region5: #{tpu_custom_call.1} parent=1 // pred_fallthru
      _
    // Predicated region
    $region6: #{tpu_custom_call.1} parent=1 // pred_check
      _
    $region7: #{tpu_custom_call.1} parent=1 // pred_check_branch
      %15 = sbr.rel (0) target = $region9
    $region8: #{tpu_custom_call.1} parent=1 // pred_region
      _
    $region9: #{tpu_custom_call.1} parent=1 // pred_fallthru
      _
    // Predicated region
    $region10: #{tpu_custom_call.1} parent=1 // pred_check
      _
    $region11: #{tpu_custom_call.1} parent=1 // pred_check_branch
      %17 = sbr.rel (0) target = $region13
    $region12: #{tpu_custom_call.1} parent=1 // pred_region
      _
    $region13: #{tpu_custom_call.1} parent=1 // pred_fallthru
      _
    // Predicated region
    $region14: #{tpu_custom_call.1} parent=1 // pred_check
      _
    $region15: #{tpu_custom_call.1} parent=1 // pred_check_branch
      %19 = sbr.rel (0) target = $region17
    $region16: #{tpu_custom_call.1} parent=1 // pred_region
      _
    $region17: #{tpu_custom_call.1} parent=1 // pred_fallthru
      _
    // Predicated region
    $region18: #{tpu_custom_call.1} parent=1 // pred_check
      _
    $region19: #{tpu_custom_call.1} parent=1 // pred_check_branch
      %21 = sbr.rel (0) target = $region21
    $region20: #{tpu_custom_call.1} parent=1 // pred_region
      _
    $region21: #{tpu_custom_call.1} parent=1 // pred_fallthru
      _
    // Predicated region
    $region22: #{tpu_custom_call.1} parent=1 // pred_check
      _
    $region23: #{tpu_custom_call.1} parent=1 // pred_check_branch
      %23 = sbr.rel (0) target = $region25
    $region24: #{tpu_custom_call.1} parent=1 // pred_region
      _
    $region25: #{tpu_custom_call.1} parent=1 // pred_fallthru
      _
    %v25 = vld [vmem:[%s0] sm:$0xff]
    %v26 = vld [vmem:[%s1] sm:$0xff]
    %v27 = vld [vmem:[%s1 + $0x8] sm:$0xff]
    %v28 = vld [vmem:[%s1 + $0x10] sm:$0xff]
    %v29 = vld [vmem:[%s1 + $0x18] sm:$0xff]
    %v30 = vunpack.c.0.s8 %v26
    %v31 = vunpack.c.1.s8 %v26
    %v32 = vunpack.c.2.s8 %v26
    %v33 = vunpack.c.3.s8 %v26
    %v34 = vunpack.c.0.s8 %v27
    %v35 = vunpack.c.1.s8 %v27
    %v36 = vunpack.c.2.s8 %v27
    %v37 = vunpack.c.3.s8 %v27
    %v38 = vunpack.c.0.s8 %v28
    %v39 = vunpack.c.1.s8 %v28
    %v40 = vunpack.c.2.s8 %v28
    %v41 = vunpack.c.3.s8 %v28
    %v42 = vunpack.c.0.s8 %v29
    %v43 = vunpack.c.1.s8 %v29
    %v44 = vunpack.c.2.s8 %v29
    %v45 = vunpack.c.3.s8 %v29
    %v46 = vld [vmem:[%s2] sm:$0xff]
    %v47 = vld [vmem:[%s2 + $0x8] sm:$0xff]
    %v48 = vld [vmem:[%s2 + $0x10] sm:$0xff]
    %v49 = vld [vmem:[%s2 + $0x18] sm:$0xff]
    %v50 = vld [vmem:[%s2 + $0x20] sm:$0xff]
    %v51 = vld [vmem:[%s2 + $0x28] sm:$0xff]
    %v52 = vld [vmem:[%s2 + $0x30] sm:$0xff]
    %v53 = vld [vmem:[%s2 + $0x38] sm:$0xff]
    %v54 = vld [vmem:[%s2 + $0x40] sm:$0xff]
    %v55 = vld [vmem:[%s2 + $0x48] sm:$0xff]
    %v56 = vld [vmem:[%s2 + $0x50] sm:$0xff]
    %v57 = vld [vmem:[%s2 + $0x58] sm:$0xff]
    %v58 = vld [vmem:[%s2 + $0x60] sm:$0xff]
    %v59 = vld [vmem:[%s2 + $0x68] sm:$0xff]
    %v60 = vld [vmem:[%s2 + $0x70] sm:$0xff]
    %v61 = vld [vmem:[%s2 + $0x78] sm:$0xff]
    %v62 = vld [vmem:[%s3] sm:$0xff]
    %v63 = vld [vmem:[%s3 + $0x8] sm:$0xff]
    %v64 = vld [vmem:[%s3 + $0x10] sm:$0xff]
    %v65 = vld [vmem:[%s3 + $0x18] sm:$0xff]
    %v66 = vld [vmem:[%s3 + $0x20] sm:$0xff]
    %v67 = vld [vmem:[%s3 + $0x28] sm:$0xff]
    %v68 = vld [vmem:[%s3 + $0x30] sm:$0xff]
    %v69 = vld [vmem:[%s3 + $0x38] sm:$0xff]
    %v70 = vld [vmem:[%s3 + $0x40] sm:$0xff]
    %v71 = vld [vmem:[%s3 + $0x48] sm:$0xff]
    %v72 = vld [vmem:[%s3 + $0x50] sm:$0xff]
    %v73 = vld [vmem:[%s3 + $0x58] sm:$0xff]
    %v74 = vld [vmem:[%s3 + $0x60] sm:$0xff]
    %v75 = vld [vmem:[%s3 + $0x68] sm:$0xff]
    %v76 = vld [vmem:[%s3 + $0x70] sm:$0xff]
    %v77 = vld [vmem:[%s3 + $0x78] sm:$0xff]
    %v78 = vand.u32 %v30, 15
    %v79 = vand.u32 %v31, 15
    %v80 = vand.u32 %v32, 15
    %v81 = vand.u32 %v33, 15
    %v82 = vand.u32 %v34, 15
    %v83 = vand.u32 %v35, 15
    %v84 = vand.u32 %v36, 15
    %v85 = vand.u32 %v37, 15
    %v86 = vand.u32 %v38, 15
    %v87 = vand.u32 %v39, 15
    %v88 = vand.u32 %v40, 15
    %v89 = vand.u32 %v41, 15
    %v90 = vand.u32 %v42, 15
    %v91 = vand.u32 %v43, 15
    %v92 = vand.u32 %v44, 15
    %v93 = vand.u32 %v45, 15
    %v94 = vcvt.s32.f32 %v78
    %v95 = vcvt.s32.f32 %v79
    %v96 = vcvt.s32.f32 %v80
    %v97 = vcvt.s32.f32 %v81
    %v98 = vcvt.s32.f32 %v82
    %v99 = vcvt.s32.f32 %v83
    %v100 = vcvt.s32.f32 %v84
    %v101 = vcvt.s32.f32 %v85
    %v102 = vcvt.s32.f32 %v86
    %v103 = vcvt.s32.f32 %v87
    %v104 = vcvt.s32.f32 %v88
    %v105 = vcvt.s32.f32 %v89
    %v106 = vcvt.s32.f32 %v90
    %v107 = vcvt.s32.f32 %v91
    %v108 = vcvt.s32.f32 %v92
    %v109 = vcvt.s32.f32 %v93
    %111 = vset.pattern.permute.xlu0 0
    %112 = vperm.xlu0 %111, %v62
    %v113 = vpop.permute.xlu0 %112
    %116 = vset.pattern.permute.xlu0 0
    %117 = vperm.xlu0 %116, %v63
    %v118 = vpop.permute.xlu0 %117
    %121 = vset.pattern.permute.xlu0 0
    %122 = vperm.xlu0 %121, %v64
    %v123 = vpop.permute.xlu0 %122
    %126 = vset.pattern.permute.xlu0 0
    %127 = vperm.xlu0 %126, %v65
    %v128 = vpop.permute.xlu0 %127
    %131 = vset.pattern.permute.xlu0 0
    %132 = vperm.xlu0 %131, %v66
    %v133 = vpop.permute.xlu0 %132
    %136 = vset.pattern.permute.xlu0 0
    %137 = vperm.xlu0 %136, %v67
    %v138 = vpop.permute.xlu0 %137
    %141 = vset.pattern.permute.xlu0 0
    %142 = vperm.xlu0 %141, %v68
    %v143 = vpop.permute.xlu0 %142
    %146 = vset.pattern.permute.xlu0 0
    %147 = vperm.xlu0 %146, %v69
    %v148 = vpop.permute.xlu0 %147
    %151 = vset.pattern.permute.xlu0 0
    %152 = vperm.xlu0 %151, %v70
    %v153 = vpop.permute.xlu0 %152
    %156 = vset.pattern.permute.xlu0 0
    %157 = vperm.xlu0 %156, %v71
    %v158 = vpop.permute.xlu0 %157
    %161 = vset.pattern.permute.xlu0 0
    %162 = vperm.xlu0 %161, %v72
    %v163 = vpop.permute.xlu0 %162
    %166 = vset.pattern.permute.xlu0 0
    %167 = vperm.xlu0 %166, %v73
    %v168 = vpop.permute.xlu0 %167
    %171 = vset.pattern.permute.xlu0 0
    %172 = vperm.xlu0 %171, %v74
    %v173 = vpop.permute.xlu0 %172
    %176 = vset.pattern.permute.xlu0 0
    %177 = vperm.xlu0 %176, %v75
    %v178 = vpop.permute.xlu0 %177
    %181 = vset.pattern.permute.xlu0 0
    %182 = vperm.xlu0 %181, %v76
    %v183 = vpop.permute.xlu0 %182
    %186 = vset.pattern.permute.xlu0 0
    %187 = vperm.xlu0 %186, %v77
    %v188 = vpop.permute.xlu0 %187
    %v190 = vsub.f32 %v94, %v113
    %v191 = vsub.f32 %v95, %v118
    %v192 = vsub.f32 %v96, %v123
    %v193 = vsub.f32 %v97, %v128
    %v194 = vsub.f32 %v98, %v133
    %v195 = vsub.f32 %v99, %v138
    %v196 = vsub.f32 %v100, %v143
    %v197 = vsub.f32 %v101, %v148
    %v198 = vsub.f32 %v102, %v153
    %v199 = vsub.f32 %v103, %v158
    %v200 = vsub.f32 %v104, %v163
    %v201 = vsub.f32 %v105, %v168
    %v202 = vsub.f32 %v106, %v173
    %v203 = vsub.f32 %v107, %v178
    %v204 = vsub.f32 %v108, %v183
    %v205 = vsub.f32 %v109, %v188
    %207 = vset.pattern.permute.xlu0 0
    %208 = vperm.xlu0 %207, %v46
    %v209 = vpop.permute.xlu0 %208
    %212 = vset.pattern.permute.xlu0 0
    %213 = vperm.xlu0 %212, %v47
    %v214 = vpop.permute.xlu0 %213
    %217 = vset.pattern.permute.xlu0 0
    %218 = vperm.xlu0 %217, %v48
    %v219 = vpop.permute.xlu0 %218
    %222 = vset.pattern.permute.xlu0 0
    %223 = vperm.xlu0 %222, %v49
    %v224 = vpop.permute.xlu0 %223
    %227 = vset.pattern.permute.xlu0 0
    %228 = vperm.xlu0 %227, %v50
    %v229 = vpop.permute.xlu0 %228
    %232 = vset.pattern.permute.xlu0 0
    %233 = vperm.xlu0 %232, %v51
    %v234 = vpop.permute.xlu0 %233
    %237 = vset.pattern.permute.xlu0 0
    %238 = vperm.xlu0 %237, %v52
    %v239 = vpop.permute.xlu0 %238
    %242 = vset.pattern.permute.xlu0 0
    %243 = vperm.xlu0 %242, %v53
    %v244 = vpop.permute.xlu0 %243
    %247 = vset.pattern.permute.xlu0 0
    %248 = vperm.xlu0 %247, %v54
    %v249 = vpop.permute.xlu0 %248
    %252 = vset.pattern.permute.xlu0 0
    %253 = vperm.xlu0 %252, %v55
    %v254 = vpop.permute.xlu0 %253
    %257 = vset.pattern.permute.xlu0 0
    %258 = vperm.xlu0 %257, %v56
    %v259 = vpop.permute.xlu0 %258
    %262 = vset.pattern.permute.xlu0 0
    %263 = vperm.xlu0 %262, %v57
    %v264 = vpop.permute.xlu0 %263
    %267 = vset.pattern.permute.xlu0 0
    %268 = vperm.xlu0 %267, %v58
    %v269 = vpop.permute.xlu0 %268
    %272 = vset.pattern.permute.xlu0 0
    %273 = vperm.xlu0 %272, %v59
    %v274 = vpop.permute.xlu0 %273
    %277 = vset.pattern.permute.xlu0 0
    %278 = vperm.xlu0 %277, %v60
    %v279 = vpop.permute.xlu0 %278
    %282 = vset.pattern.permute.xlu0 0
    %283 = vperm.xlu0 %282, %v61
    %v284 = vpop.permute.xlu0 %283
    %v286 = vmul.f32 %v190, %v209
    %v287 = vmul.f32 %v191, %v214
    %v288 = vmul.f32 %v192, %v219
    %v289 = vmul.f32 %v193, %v224
    %v290 = vmul.f32 %v194, %v229
    %v291 = vmul.f32 %v195, %v234
    %v292 = vmul.f32 %v196, %v239
    %v293 = vmul.f32 %v197, %v244
    %v294 = vmul.f32 %v198, %v249
    %v295 = vmul.f32 %v199, %v254
    %v296 = vmul.f32 %v200, %v259
    %v297 = vmul.f32 %v201, %v264
    %v298 = vmul.f32 %v202, %v269
    %v299 = vmul.f32 %v203, %v274
    %v300 = vmul.f32 %v204, %v279
    %v301 = vmul.f32 %v205, %v284
    %v302 = vpack.c.bf16 %v287, %v286
    %v303 = vpack.c.bf16 %v289, %v288
    %v304 = vpack.c.bf16 %v291, %v290
    %v305 = vpack.c.bf16 %v293, %v292
    %v306 = vpack.c.bf16 %v295, %v294
    %v307 = vpack.c.bf16 %v297, %v296
    %v308 = vpack.c.bf16 %v299, %v298
    %v309 = vpack.c.bf16 %v301, %v300
    %v310 = vshra.s32 %v30, 4
    %v311 = vshra.s32 %v31, 4
    %v312 = vshra.s32 %v32, 4
    %v313 = vshra.s32 %v33, 4
    %v314 = vshra.s32 %v34, 4
    %v315 = vshra.s32 %v35, 4
    %v316 = vshra.s32 %v36, 4
    %v317 = vshra.s32 %v37, 4
    %v318 = vshra.s32 %v38, 4
    %v319 = vshra.s32 %v39, 4
    %v320 = vshra.s32 %v40, 4
    %v321 = vshra.s32 %v41, 4
    %v322 = vshra.s32 %v42, 4
    %v323 = vshra.s32 %v43, 4
    %v324 = vshra.s32 %v44, 4
    %v325 = vshra.s32 %v45, 4
    %v326 = vand.u32 %v310, 15
    %v327 = vand.u32 %v311, 15
    %v328 = vand.u32 %v312, 15
    %v329 = vand.u32 %v313, 15
    %v330 = vand.u32 %v314, 15
    %v331 = vand.u32 %v315, 15
    %v332 = vand.u32 %v316, 15
    %v333 = vand.u32 %v317, 15
    %v334 = vand.u32 %v318, 15
    %v335 = vand.u32 %v319, 15
    %v336 = vand.u32 %v320, 15
    %v337 = vand.u32 %v321, 15
    %v338 = vand.u32 %v322, 15
    %v339 = vand.u32 %v323, 15
    %v340 = vand.u32 %v324, 15
    %v341 = vand.u32 %v325, 15
    %v342 = vcvt.s32.f32 %v326
    %v343 = vcvt.s32.f32 %v327
    %v344 = vcvt.s32.f32 %v328
    %v345 = vcvt.s32.f32 %v329
    %v346 = vcvt.s32.f32 %v330
    %v347 = vcvt.s32.f32 %v331
    %v348 = vcvt.s32.f32 %v332
    %v349 = vcvt.s32.f32 %v333
    %v350 = vcvt.s32.f32 %v334
    %v351 = vcvt.s32.f32 %v335
    %v352 = vcvt.s32.f32 %v336
    %v353 = vcvt.s32.f32 %v337
    %v354 = vcvt.s32.f32 %v338
    %v355 = vcvt.s32.f32 %v339
    %v356 = vcvt.s32.f32 %v340
    %v357 = vcvt.s32.f32 %v341
    %v358 = vsub.f32 %v342, %v113
    %v359 = vsub.f32 %v343, %v118
    %v360 = vsub.f32 %v344, %v123
    %v361 = vsub.f32 %v345, %v128
    %v362 = vsub.f32 %v346, %v133
    %v363 = vsub.f32 %v347, %v138
    %v364 = vsub.f32 %v348, %v143
    %v365 = vsub.f32 %v349, %v148
    %v366 = vsub.f32 %v350, %v153
    %v367 = vsub.f32 %v351, %v158
    %v368 = vsub.f32 %v352, %v163
    %v369 = vsub.f32 %v353, %v168
    %v370 = vsub.f32 %v354, %v173
    %v371 = vsub.f32 %v355, %v178
    %v372 = vsub.f32 %v356, %v183
    %v373 = vsub.f32 %v357, %v188
    %v374 = vmul.f32 %v358, %v209
    %v375 = vmul.f32 %v359, %v214
    %v376 = vmul.f32 %v360, %v219
    %v377 = vmul.f32 %v361, %v224
    %v378 = vmul.f32 %v362, %v229
    %v379 = vmul.f32 %v363, %v234
    %v380 = vmul.f32 %v364, %v239
    %v381 = vmul.f32 %v365, %v244
    %v382 = vmul.f32 %v366, %v249
    %v383 = vmul.f32 %v367, %v254
    %v384 = vmul.f32 %v368, %v259
    %v385 = vmul.f32 %v369, %v264
    %v386 = vmul.f32 %v370, %v269
    %v387 = vmul.f32 %v371, %v274
    %v388 = vmul.f32 %v372, %v279
    %v389 = vmul.f32 %v373, %v284
    %v390 = vpack.c.bf16 %v375, %v374
    %v391 = vpack.c.bf16 %v377, %v376
    %v392 = vpack.c.bf16 %v379, %v378
    %v393 = vpack.c.bf16 %v381, %v380
    %v394 = vpack.c.bf16 %v383, %v382
    %v395 = vpack.c.bf16 %v385, %v384
    %v396 = vpack.c.bf16 %v387, %v386
    %v397 = vpack.c.bf16 %v389, %v388
    %v398 = vld [vmem:[%s4] sm:$0xf]
    %v399 = vld [vmem:[%s4 + $0x4] sm:$0xf]
    %v400 = vld [vmem:[%s4 + $0x8] sm:$0xf]
    %v401 = vld [vmem:[%s4 + $0xc] sm:$0xf]
    %v402 = vld [vmem:[%s4 + $0x10] sm:$0xf]
    %v403 = vld [vmem:[%s4 + $0x14] sm:$0xf]
    %v404 = vld [vmem:[%s4 + $0x18] sm:$0xf]
    %v405 = vld [vmem:[%s4 + $0x1c] sm:$0xf]
    %v406 = vld [vmem:[%s4 + $0x20] sm:$0xf]
    %v407 = vld [vmem:[%s4 + $0x24] sm:$0xf]
    %v408 = vld [vmem:[%s4 + $0x28] sm:$0xf]
    %v409 = vld [vmem:[%s4 + $0x2c] sm:$0xf]
    %v410 = vld [vmem:[%s4 + $0x30] sm:$0xf]
    %v411 = vld [vmem:[%s4 + $0x34] sm:$0xf]
    %v412 = vld [vmem:[%s4 + $0x38] sm:$0xf]
    %v413 = vld [vmem:[%s4 + $0x3c] sm:$0xf]
    %v415 = vunpack.c.h.b16 %v25
    %v416 = vpack.c.b16 %v415, %v415
    %418 = vmatprep.subr.bf16.mxu0 0
    %419 = vmatpush1.bf16.xpose.msra.mxu0 %v390
    %420 = vmatprep.subr.bf16.mxu0 0
    %421 = vmatpush1.bf16.xpose.msra.mxu0 %v391
    %422 = vmatprep.subr.bf16.mxu0 0
    %423 = vmatpush1.bf16.xpose.msra.mxu0 %v392
    %424 = vmatprep.subr.bf16.mxu0 0
    %425 = vmatpush1.bf16.xpose.msra.mxu0 %v393
    %426 = vmatprep.subr.bf16.mxu0 0
    %427 = vmatpush1.bf16.xpose.msra.mxu0 %v394
    %428 = vmatprep.subr.bf16.mxu0 0
    %429 = vmatpush1.bf16.xpose.msra.mxu0 %v395
    %430 = vmatprep.subr.bf16.mxu0 0
    %431 = vmatpush1.bf16.xpose.msra.mxu0 %v396
    %432 = vmatprep.subr.bf16.mxu0 0
    %433 = vmatpush1.bf16.xpose.msra.mxu0 %v397
    %434 = vmatprep.subr.bf16.mxu0 0
    %435 = vmatpush1.bf16.xpose.msra.mxu0 0
    %436 = vmatprep.subr.bf16.mxu0 0
    %437 = vmatpush1.bf16.xpose.msra.mxu0 0
    %438 = vmatprep.subr.bf16.mxu0 0
    %439 = vmatpush1.bf16.xpose.msra.mxu0 0
    %440 = vmatprep.subr.bf16.mxu0 0
    %441 = vmatpush1.bf16.xpose.msra.mxu0 0
    %442 = vmatprep.subr.bf16.mxu0 0
    %443 = vmatpush1.bf16.xpose.msra.mxu0 0
    %444 = vmatprep.subr.bf16.mxu0 0
    %445 = vmatpush1.bf16.xpose.msra.mxu0 0
    %446 = vmatprep.subr.bf16.mxu0 0
    %447 = vmatpush1.bf16.xpose.msra.mxu0 0
    %448 = vmatprep.subr.bf16.mxu0 0
    %449 = vmatpush1.bf16.xpose.msra.mxu0 0
    %450 = vmatprep.mubr.bf16.mxu0 0
    %451 = vmatmul.mubr.bf16.gmra.mrb[0].mxu0 %v416
    %v452 = vpop.f32.mrb[0].mxu0
    %v453 = vadd.f32 0.0, %v452
    %v454 = vpop.f32.mrb[0].mxu0
    %v455 = vpop.f32.mrb[0].mxu0
    %v456 = vpop.f32.mrb[0].mxu0
    %457 = vdwg.mxu0
    %458 = vmatprep.subr.bf16.mxu0 0
    %459 = vmatpush1.bf16.xpose.msra.mxu0 %v302
    %460 = vmatprep.subr.bf16.mxu0 0
    %461 = vmatpush1.bf16.xpose.msra.mxu0 %v303
    %462 = vmatprep.subr.bf16.mxu0 0
    %463 = vmatpush1.bf16.xpose.msra.mxu0 %v304
    %464 = vmatprep.subr.bf16.mxu0 0
    %465 = vmatpush1.bf16.xpose.msra.mxu0 %v305
    %466 = vmatprep.subr.bf16.mxu0 0
    %467 = vmatpush1.bf16.xpose.msra.mxu0 %v306
    %468 = vmatprep.subr.bf16.mxu0 0
    %469 = vmatpush1.bf16.xpose.msra.mxu0 %v307
    %470 = vmatprep.subr.bf16.mxu0 0
    %471 = vmatpush1.bf16.xpose.msra.mxu0 %v308
    %472 = vmatprep.subr.bf16.mxu0 0
    %473 = vmatpush1.bf16.xpose.msra.mxu0 %v309
    %474 = vmatprep.subr.bf16.mxu0 0
    %475 = vmatpush1.bf16.xpose.msra.mxu0 0
    %476 = vmatprep.subr.bf16.mxu0 0
    %477 = vmatpush1.bf16.xpose.msra.mxu0 0
    %478 = vmatprep.subr.bf16.mxu0 0
    %479 = vmatpush1.bf16.xpose.msra.mxu0 0
    %480 = vmatprep.subr.bf16.mxu0 0
    %481 = vmatpush1.bf16.xpose.msra.mxu0 0
    %482 = vmatprep.subr.bf16.mxu0 0
    %483 = vmatpush1.bf16.xpose.msra.mxu0 0
    %484 = vmatprep.subr.bf16.mxu0 0
    %485 = vmatpush1.bf16.xpose.msra.mxu0 0
    %486 = vmatprep.subr.bf16.mxu0 0
    %487 = vmatpush1.bf16.xpose.msra.mxu0 0
    %488 = vmatprep.subr.bf16.mxu0 0
    %489 = vmatpush1.bf16.xpose.msra.mxu0 0
    %490 = vmatprep.mubr.bf16.mxu0 0
    %491 = vmatmul.mubr.bf16.gmra.mrb[0].mxu0 %v25
    %v492 = vpop.f32.mrb[0].mxu0
    %v493 = vadd.f32 %v453, %v492
    %v494 = vpop.f32.mrb[0].mxu0
    %v495 = vpop.f32.mrb[0].mxu0
    %v496 = vpop.f32.mrb[0].mxu0
    %497 = vdwg.mxu0
    %v498 = vpack.c.bf16 %v493, %v493
    %v499 = vld [vmem:[%s5] sm:$0x1]
    %v501 = vlaneseq
    %v502 = vshrl.u32 %v501, 7
    %v503 = vsub.s32 0, %v502
    %v504 = vrot.slane %v499, %v503
    %v522 = vunpack.c.l.b16 %v398
    %v523 = vunpack.c.l.b16 %v399
    %v524 = vunpack.c.l.b16 %v400
    %v525 = vunpack.c.l.b16 %v401
    %v526 = vunpack.c.l.b16 %v402
    %v527 = vunpack.c.l.b16 %v403
    %v528 = vunpack.c.l.b16 %v404
    %v529 = vunpack.c.l.b16 %v405
    %v530 = vunpack.c.l.b16 %v406
    %v531 = vunpack.c.l.b16 %v407
    %v532 = vunpack.c.l.b16 %v408
    %v533 = vunpack.c.l.b16 %v409
    %v534 = vunpack.c.l.b16 %v410
    %v535 = vunpack.c.l.b16 %v411
    %v536 = vunpack.c.l.b16 %v412
    %v537 = vunpack.c.l.b16 %v413
    %v538 = vpack.c.b16 %v523, %v522
    %v539 = vpack.c.b16 %v525, %v524
    %v540 = vpack.c.b16 %v527, %v526
    %v541 = vpack.c.b16 %v529, %v528
    %v542 = vpack.c.b16 %v531, %v530
    %v543 = vpack.c.b16 %v533, %v532
    %v544 = vpack.c.b16 %v535, %v534
    %v545 = vpack.c.b16 %v537, %v536
    %554 = vmatprep.subr.bf16.mxu0 0
    %555 = vmatpush1.bf16.xpose.msra.mxu0 %v538
    %556 = vmatprep.subr.bf16.mxu0 0
    %557 = vmatpush1.bf16.xpose.msra.mxu0 %v539
    %558 = vmatprep.subr.bf16.mxu0 0
    %559 = vmatpush1.bf16.xpose.msra.mxu0 %v540
    %560 = vmatprep.subr.bf16.mxu0 0
    %561 = vmatpush1.bf16.xpose.msra.mxu0 %v541
    %562 = vmatprep.subr.bf16.mxu0 0
    %563 = vmatpush1.bf16.xpose.msra.mxu0 %v542
    %564 = vmatprep.subr.bf16.mxu0 0
    %565 = vmatpush1.bf16.xpose.msra.mxu0 %v543
    %566 = vmatprep.subr.bf16.mxu0 0
    %567 = vmatpush1.bf16.xpose.msra.mxu0 %v544
    %568 = vmatprep.subr.bf16.mxu0 0
    %569 = vmatpush1.bf16.xpose.msra.mxu0 %v545
    %570 = vmatprep.subr.bf16.mxu0 0
    %571 = vmatpush1.bf16.xpose.msra.mxu0 0
    %572 = vmatprep.subr.bf16.mxu0 0
    %573 = vmatpush1.bf16.xpose.msra.mxu0 0
    %574 = vmatprep.subr.bf16.mxu0 0
    %575 = vmatpush1.bf16.xpose.msra.mxu0 0
    %576 = vmatprep.subr.bf16.mxu0 0
    %577 = vmatpush1.bf16.xpose.msra.mxu0 0
    %578 = vmatprep.subr.bf16.mxu0 0
    %579 = vmatpush1.bf16.xpose.msra.mxu0 0
    %580 = vmatprep.subr.bf16.mxu0 0
    %581 = vmatpush1.bf16.xpose.msra.mxu0 0
    %582 = vmatprep.subr.bf16.mxu0 0
    %583 = vmatpush1.bf16.xpose.msra.mxu0 0
    %584 = vmatprep.subr.bf16.mxu0 0
    %585 = vmatpush1.bf16.xpose.msra.mxu0 0
    %586 = vmatprep.mubr.bf16.mxu0 0
    %587 = vmatmul.mubr.bf16.gmra.mrb[0].mxu0 %v498
    %v588 = vpop.f32.mrb[0].mxu0
    %v589 = vadd.f32 %v504, %v588
    %v590 = vpop.f32.mrb[0].mxu0
    %v591 = vpop.f32.mrb[0].mxu0
    %v592 = vpop.f32.mrb[0].mxu0
    %593 = vdwg.mxu0
    %v594 = vpack.c.bf16 %v589, %v589
    %595 = vst [vmem:[#allocation2] sm:$0xf] %v594
    %s596 = scalar_lea.vmem %s1, 32
    %v597 = vld [vmem:[%s596] sm:$0xff]
    %v598 = vld [vmem:[%s596 + $0x8] sm:$0xff]
    %v599 = vld [vmem:[%s596 + $0x10] sm:$0xff]
    %v600 = vld [vmem:[%s596 + $0x18] sm:$0xff]
    %v601 = vunpack.c.0.s8 %v597
    %v602 = vunpack.c.1.s8 %v597
    %v603 = vunpack.c.2.s8 %v597
    %v604 = vunpack.c.3.s8 %v597
    %v605 = vunpack.c.0.s8 %v598
    %v606 = vunpack.c.1.s8 %v598
    %v607 = vunpack.c.2.s8 %v598
    %v608 = vunpack.c.3.s8 %v598
    %v609 = vunpack.c.0.s8 %v599
    %v610 = vunpack.c.1.s8 %v599
    %v611 = vunpack.c.2.s8 %v599
    %v612 = vunpack.c.3.s8 %v599
    %v613 = vunpack.c.0.s8 %v600
    %v614 = vunpack.c.1.s8 %v600
    %v615 = vunpack.c.2.s8 %v600
    %v616 = vunpack.c.3.s8 %v600
    %s617 = scalar_lea.vmem %s2, 128
    %v618 = vld [vmem:[%s617] sm:$0xff]
    %v619 = vld [vmem:[%s617 + $0x8] sm:$0xff]
    %v620 = vld [vmem:[%s617 + $0x10] sm:$0xff]
    %v621 = vld [vmem:[%s617 + $0x18] sm:$0xff]
    %v622 = vld [vmem:[%s617 + $0x20] sm:$0xff]
    %v623 = vld [vmem:[%s617 + $0x28] sm:$0xff]
    %v624 = vld [vmem:[%s617 + $0x30] sm:$0xff]
    %v625 = vld [vmem:[%s617 + $0x38] sm:$0xff]
    %v626 = vld [vmem:[%s617 + $0x40] sm:$0xff]
    %v627 = vld [vmem:[%s617 + $0x48] sm:$0xff]
    %v628 = vld [vmem:[%s617 + $0x50] sm:$0xff]
    %v629 = vld [vmem:[%s617 + $0x58] sm:$0xff]
    %v630 = vld [vmem:[%s617 + $0x60] sm:$0xff]
    %v631 = vld [vmem:[%s617 + $0x68] sm:$0xff]
    %v632 = vld [vmem:[%s617 + $0x70] sm:$0xff]
    %v633 = vld [vmem:[%s617 + $0x78] sm:$0xff]
    %s634 = scalar_lea.vmem %s3, 128
    %v635 = vld [vmem:[%s634] sm:$0xff]
    %v636 = vld [vmem:[%s634 + $0x8] sm:$0xff]
    %v637 = vld [vmem:[%s634 + $0x10] sm:$0xff]
    %v638 = vld [vmem:[%s634 + $0x18] sm:$0xff]
    %v639 = vld [vmem:[%s634 + $0x20] sm:$0xff]
    %v640 = vld [vmem:[%s634 + $0x28] sm:$0xff]
    %v641 = vld [vmem:[%s634 + $0x30] sm:$0xff]
    %v642 = vld [vmem:[%s634 + $0x38] sm:$0xff]
    %v643 = vld [vmem:[%s634 + $0x40] sm:$0xff]
    %v644 = vld [vmem:[%s634 + $0x48] sm:$0xff]
    %v645 = vld [vmem:[%s634 + $0x50] sm:$0xff]
    %v646 = vld [vmem:[%s634 + $0x58] sm:$0xff]
    %v647 = vld [vmem:[%s634 + $0x60] sm:$0xff]
    %v648 = vld [vmem:[%s634 + $0x68] sm:$0xff]
    %v649 = vld [vmem:[%s634 + $0x70] sm:$0xff]
    %v650 = vld [vmem:[%s634 + $0x78] sm:$0xff]
    %v651 = vand.u32 %v601, 15
    %v652 = vand.u32 %v602, 15
    %v653 = vand.u32 %v603, 15
    %v654 = vand.u32 %v604, 15
    %v655 = vand.u32 %v605, 15
    %v656 = vand.u32 %v606, 15
    %v657 = vand.u32 %v607, 15
    %v658 = vand.u32 %v608, 15
    %v659 = vand.u32 %v609, 15
    %v660 = vand.u32 %v610, 15
    %v661 = vand.u32 %v611, 15
    %v662 = vand.u32 %v612, 15
    %v663 = vand.u32 %v613, 15
    %v664 = vand.u32 %v614, 15
    %v665 = vand.u32 %v615, 15
    %v666 = vand.u32 %v616, 15
    %v667 = vcvt.s32.f32 %v651
    %v668 = vcvt.s32.f32 %v652
    %v669 = vcvt.s32.f32 %v653
    %v670 = vcvt.s32.f32 %v654
    %v671 = vcvt.s32.f32 %v655
    %v672 = vcvt.s32.f32 %v656
    %v673 = vcvt.s32.f32 %v657
    %v674 = vcvt.s32.f32 %v658
    %v675 = vcvt.s32.f32 %v659
    %v676 = vcvt.s32.f32 %v660
    %v677 = vcvt.s32.f32 %v661
    %v678 = vcvt.s32.f32 %v662
    %v679 = vcvt.s32.f32 %v663
    %v680 = vcvt.s32.f32 %v664
    %v681 = vcvt.s32.f32 %v665
    %v682 = vcvt.s32.f32 %v666
    %684 = vset.pattern.permute.xlu0 0
    %685 = vperm.xlu0 %684, %v635
    %v686 = vpop.permute.xlu0 %685
    %689 = vset.pattern.permute.xlu0 0
    %690 = vperm.xlu0 %689, %v636
    %v691 = vpop.permute.xlu0 %690
    %694 = vset.pattern.permute.xlu0 0
    %695 = vperm.xlu0 %694, %v637
    %v696 = vpop.permute.xlu0 %695
    %699 = vset.pattern.permute.xlu0 0
    %700 = vperm.xlu0 %699, %v638
    %v701 = vpop.permute.xlu0 %700
    %704 = vset.pattern.permute.xlu0 0
    %705 = vperm.xlu0 %704, %v639
    %v706 = vpop.permute.xlu0 %705
    %709 = vset.pattern.permute.xlu0 0
    %710 = vperm.xlu0 %709, %v640
    %v711 = vpop.permute.xlu0 %710
    %714 = vset.pattern.permute.xlu0 0
    %715 = vperm.xlu0 %714, %v641
    %v716 = vpop.permute.xlu0 %715
    %719 = vset.pattern.permute.xlu0 0
    %720 = vperm.xlu0 %719, %v642
    %v721 = vpop.permute.xlu0 %720
    %724 = vset.pattern.permute.xlu0 0
    %725 = vperm.xlu0 %724, %v643
    %v726 = vpop.permute.xlu0 %725
    %729 = vset.pattern.permute.xlu0 0
    %730 = vperm.xlu0 %729, %v644
    %v731 = vpop.permute.xlu0 %730
    %734 = vset.pattern.permute.xlu0 0
    %735 = vperm.xlu0 %734, %v645
    %v736 = vpop.permute.xlu0 %735
    %739 = vset.pattern.permute.xlu0 0
    %740 = vperm.xlu0 %739, %v646
    %v741 = vpop.permute.xlu0 %740
    %744 = vset.pattern.permute.xlu0 0
    %745 = vperm.xlu0 %744, %v647
    %v746 = vpop.permute.xlu0 %745
    %749 = vset.pattern.permute.xlu0 0
    %750 = vperm.xlu0 %749, %v648
    %v751 = vpop.permute.xlu0 %750
    %754 = vset.pattern.permute.xlu0 0
    %755 = vperm.xlu0 %754, %v649
    %v756 = vpop.permute.xlu0 %755
    %759 = vset.pattern.permute.xlu0 0
    %760 = vperm.xlu0 %759, %v650
    %v761 = vpop.permute.xlu0 %760
    %v763 = vsub.f32 %v667, %v686
    %v764 = vsub.f32 %v668, %v691
    %v765 = vsub.f32 %v669, %v696
    %v766 = vsub.f32 %v670, %v701
    %v767 = vsub.f32 %v671, %v706
    %v768 = vsub.f32 %v672, %v711
    %v769 = vsub.f32 %v673, %v716
    %v770 = vsub.f32 %v674, %v721
    %v771 = vsub.f32 %v675, %v726
    %v772 = vsub.f32 %v676, %v731
    %v773 = vsub.f32 %v677, %v736
    %v774 = vsub.f32 %v678, %v741
    %v775 = vsub.f32 %v679, %v746
    %v776 = vsub.f32 %v680, %v751
    %v777 = vsub.f32 %v681, %v756
    %v778 = vsub.f32 %v682, %v761
    %780 = vset.pattern.permute.xlu0 0
    %781 = vperm.xlu0 %780, %v618
    %v782 = vpop.permute.xlu0 %781
    %785 = vset.pattern.permute.xlu0 0
    %786 = vperm.xlu0 %785, %v619
    %v787 = vpop.permute.xlu0 %786
    %790 = vset.pattern.permute.xlu0 0
    %791 = vperm.xlu0 %790, %v620
    %v792 = vpop.permute.xlu0 %791
    %795 = vset.pattern.permute.xlu0 0
    %796 = vperm.xlu0 %795, %v621
    %v797 = vpop.permute.xlu0 %796
    %800 = vset.pattern.permute.xlu0 0
    %801 = vperm.xlu0 %800, %v622
    %v802 = vpop.permute.xlu0 %801
    %805 = vset.pattern.permute.xlu0 0
    %806 = vperm.xlu0 %805, %v623
    %v807 = vpop.permute.xlu0 %806
    %810 = vset.pattern.permute.xlu0 0
    %811 = vperm.xlu0 %810, %v624
    %v812 = vpop.permute.xlu0 %811
    %815 = vset.pattern.permute.xlu0 0
    %816 = vperm.xlu0 %815, %v625
    %v817 = vpop.permute.xlu0 %816
    %820 = vset.pattern.permute.xlu0 0
    %821 = vperm.xlu0 %820, %v626
    %v822 = vpop.permute.xlu0 %821
    %825 = vset.pattern.permute.xlu0 0
    %826 = vperm.xlu0 %825, %v627
    %v827 = vpop.permute.xlu0 %826
    %830 = vset.pattern.permute.xlu0 0
    %831 = vperm.xlu0 %830, %v628
    %v832 = vpop.permute.xlu0 %831
    %835 = vset.pattern.permute.xlu0 0
    %836 = vperm.xlu0 %835, %v629
    %v837 = vpop.permute.xlu0 %836
    %840 = vset.pattern.permute.xlu0 0
    %841 = vperm.xlu0 %840, %v630
    %v842 = vpop.permute.xlu0 %841
    %845 = vset.pattern.permute.xlu0 0
    %846 = vperm.xlu0 %845, %v631
    %v847 = vpop.permute.xlu0 %846
    %850 = vset.pattern.permute.xlu0 0
    %851 = vperm.xlu0 %850, %v632
    %v852 = vpop.permute.xlu0 %851
    %855 = vset.pattern.permute.xlu0 0
    %856 = vperm.xlu0 %855, %v633
    %v857 = vpop.permute.xlu0 %856
    %v859 = vmul.f32 %v763, %v782
    %v860 = vmul.f32 %v764, %v787
    %v861 = vmul.f32 %v765, %v792
    %v862 = vmul.f32 %v766, %v797
    %v863 = vmul.f32 %v767, %v802
    %v864 = vmul.f32 %v768, %v807
    %v865 = vmul.f32 %v769, %v812
    %v866 = vmul.f32 %v770, %v817
    %v867 = vmul.f32 %v771, %v822
    %v868 = vmul.f32 %v772, %v827
    %v869 = vmul.f32 %v773, %v832
    %v870 = vmul.f32 %v774, %v837
    %v871 = vmul.f32 %v775, %v842
    %v872 = vmul.f32 %v776, %v847
    %v873 = vmul.f32 %v777, %v852
    %v874 = vmul.f32 %v778, %v857
    %v875 = vpack.c.bf16 %v860, %v859
    %v876 = vpack.c.bf16 %v862, %v861
    %v877 = vpack.c.bf16 %v864, %v863
    %v878 = vpack.c.bf16 %v866, %v865
    %v879 = vpack.c.bf16 %v868, %v867
    %v880 = vpack.c.bf16 %v870, %v869
    %v881 = vpack.c.bf16 %v872, %v871
    %v882 = vpack.c.bf16 %v874, %v873
    %v883 = vshra.s32 %v601, 4
    %v884 = vshra.s32 %v602, 4
    %v885 = vshra.s32 %v603, 4
    %v886 = vshra.s32 %v604, 4
    %v887 = vshra.s32 %v605, 4
    %v888 = vshra.s32 %v606, 4
    %v889 = vshra.s32 %v607, 4
    %v890 = vshra.s32 %v608, 4
    %v891 = vshra.s32 %v609, 4
    %v892 = vshra.s32 %v610, 4
    %v893 = vshra.s32 %v611, 4
    %v894 = vshra.s32 %v612, 4
    %v895 = vshra.s32 %v613, 4
    %v896 = vshra.s32 %v614, 4
    %v897 = vshra.s32 %v615, 4
    %v898 = vshra.s32 %v616, 4
    %v899 = vand.u32 %v883, 15
    %v900 = vand.u32 %v884, 15
    %v901 = vand.u32 %v885, 15
    %v902 = vand.u32 %v886, 15
    %v903 = vand.u32 %v887, 15
    %v904 = vand.u32 %v888, 15
    %v905 = vand.u32 %v889, 15
    %v906 = vand.u32 %v890, 15
    %v907 = vand.u32 %v891, 15
    %v908 = vand.u32 %v892, 15
    %v909 = vand.u32 %v893, 15
    %v910 = vand.u32 %v894, 15
    %v911 = vand.u32 %v895, 15
    %v912 = vand.u32 %v896, 15
    %v913 = vand.u32 %v897, 15
    %v914 = vand.u32 %v898, 15
    %v915 = vcvt.s32.f32 %v899
    %v916 = vcvt.s32.f32 %v900
    %v917 = vcvt.s32.f32 %v901
    %v918 = vcvt.s32.f32 %v902
    %v919 = vcvt.s32.f32 %v903
    %v920 = vcvt.s32.f32 %v904
    %v921 = vcvt.s32.f32 %v905
    %v922 = vcvt.s32.f32 %v906
    %v923 = vcvt.s32.f32 %v907
    %v924 = vcvt.s32.f32 %v908
    %v925 = vcvt.s32.f32 %v909
    %v926 = vcvt.s32.f32 %v910
    %v927 = vcvt.s32.f32 %v911
    %v928 = vcvt.s32.f32 %v912
    %v929 = vcvt.s32.f32 %v913
    %v930 = vcvt.s32.f32 %v914
    %v931 = vsub.f32 %v915, %v686
    %v932 = vsub.f32 %v916, %v691
    %v933 = vsub.f32 %v917, %v696
    %v934 = vsub.f32 %v918, %v701
    %v935 = vsub.f32 %v919, %v706
    %v936 = vsub.f32 %v920, %v711
    %v937 = vsub.f32 %v921, %v716
    %v938 = vsub.f32 %v922, %v721
    %v939 = vsub.f32 %v923, %v726
    %v940 = vsub.f32 %v924, %v731
    %v941 = vsub.f32 %v925, %v736
    %v942 = vsub.f32 %v926, %v741
    %v943 = vsub.f32 %v927, %v746
    %v944 = vsub.f32 %v928, %v751
    %v945 = vsub.f32 %v929, %v756
    %v946 = vsub.f32 %v930, %v761
    %v947 = vmul.f32 %v931, %v782
    %v948 = vmul.f32 %v932, %v787
    %v949 = vmul.f32 %v933, %v792
    %v950 = vmul.f32 %v934, %v797
    %v951 = vmul.f32 %v935, %v802
    %v952 = vmul.f32 %v936, %v807
    %v953 = vmul.f32 %v937, %v812
    %v954 = vmul.f32 %v938, %v817
    %v955 = vmul.f32 %v939, %v822
    %v956 = vmul.f32 %v940, %v827
    %v957 = vmul.f32 %v941, %v832
    %v958 = vmul.f32 %v942, %v837
    %v959 = vmul.f32 %v943, %v842
    %v960 = vmul.f32 %v944, %v847
    %v961 = vmul.f32 %v945, %v852
    %v962 = vmul.f32 %v946, %v857
    %v963 = vpack.c.bf16 %v948, %v947
    %v964 = vpack.c.bf16 %v950, %v949
    %v965 = vpack.c.bf16 %v952, %v951
    %v966 = vpack.c.bf16 %v954, %v953
    %v967 = vpack.c.bf16 %v956, %v955
    %v968 = vpack.c.bf16 %v958, %v957
    %v969 = vpack.c.bf16 %v960, %v959
    %v970 = vpack.c.bf16 %v962, %v961
    %s971 = scalar_lea.vmem %s4, 64
    %v972 = vld [vmem:[%s971] sm:$0xf]
    %v973 = vld [vmem:[%s971 + $0x4] sm:$0xf]
    %v974 = vld [vmem:[%s971 + $0x8] sm:$0xf]
    %v975 = vld [vmem:[%s971 + $0xc] sm:$0xf]
    %v976 = vld [vmem:[%s971 + $0x10] sm:$0xf]
    %v977 = vld [vmem:[%s971 + $0x14] sm:$0xf]
    %v978 = vld [vmem:[%s971 + $0x18] sm:$0xf]
    %v979 = vld [vmem:[%s971 + $0x1c] sm:$0xf]
    %v980 = vld [vmem:[%s971 + $0x20] sm:$0xf]
    %v981 = vld [vmem:[%s971 + $0x24] sm:$0xf]
    %v982 = vld [vmem:[%s971 + $0x28] sm:$0xf]
    %v983 = vld [vmem:[%s971 + $0x2c] sm:$0xf]
    %v984 = vld [vmem:[%s971 + $0x30] sm:$0xf]
    %v985 = vld [vmem:[%s971 + $0x34] sm:$0xf]
    %v986 = vld [vmem:[%s971 + $0x38] sm:$0xf]
    %v987 = vld [vmem:[%s971 + $0x3c] sm:$0xf]
    %988 = vmatprep.subr.bf16.mxu0 0
    %989 = vmatpush1.bf16.xpose.msra.mxu0 %v963
    %990 = vmatprep.subr.bf16.mxu0 0
    %991 = vmatpush1.bf16.xpose.msra.mxu0 %v964
    %992 = vmatprep.subr.bf16.mxu0 0
    %993 = vmatpush1.bf16.xpose.msra.mxu0 %v965
    %994 = vmatprep.subr.bf16.mxu0 0
    %995 = vmatpush1.bf16.xpose.msra.mxu0 %v966
    %996 = vmatprep.subr.bf16.mxu0 0
    %997 = vmatpush1.bf16.xpose.msra.mxu0 %v967
    %998 = vmatprep.subr.bf16.mxu0 0
    %999 = vmatpush1.bf16.xpose.msra.mxu0 %v968
    %1000 = vmatprep.subr.bf16.mxu0 0
    %1001 = vmatpush1.bf16.xpose.msra.mxu0 %v969
    %1002 = vmatprep.subr.bf16.mxu0 0
    %1003 = vmatpush1.bf16.xpose.msra.mxu0 %v970
    %1004 = vmatprep.subr.bf16.mxu0 0
    %1005 = vmatpush1.bf16.xpose.msra.mxu0 0
    %1006 = vmatprep.subr.bf16.mxu0 0
    %1007 = vmatpush1.bf16.xpose.msra.mxu0 0
    %1008 = vmatprep.subr.bf16.mxu0 0
    %1009 = vmatpush1.bf16.xpose.msra.mxu0 0
    %1010 = vmatprep.subr.bf16.mxu0 0
    %1011 = vmatpush1.bf16.xpose.msra.mxu0 0
    %1012 = vmatprep.subr.bf16.mxu0 0
    %1013 = vmatpush1.bf16.xpose.msra.mxu0 0
    %1014 = vmatprep.subr.bf16.mxu0 0
    %1015 = vmatpush1.bf16.xpose.msra.mxu0 0
    %1016 = vmatprep.subr.bf16.mxu0 0
    %1017 = vmatpush1.bf16.xpose.msra.mxu0 0
    %1018 = vmatprep.subr.bf16.mxu0 0
    %1019 = vmatpush1.bf16.xpose.msra.mxu0 0
    %1020 = vmatprep.mubr.bf16.mxu0 0
    %1021 = vmatmul.mubr.bf16.gmra.mrb[0].mxu0 %v416
    %v1022 = vpop.f32.mrb[0].mxu0
    %v1023 = vadd.f32 0.0, %v1022
    %v1024 = vpop.f32.mrb[0].mxu0
    %v1025 = vpop.f32.mrb[0].mxu0
    %v1026 = vpop.f32.mrb[0].mxu0
    %1027 = vdwg.mxu0
    %1028 = vmatprep.subr.bf16.mxu0 0
    %1029 = vmatpush1.bf16.xpose.msra.mxu0 %v875
    %1030 = vmatprep.subr.bf16.mxu0 0
    %1031 = vmatpush1.bf16.xpose.msra.mxu0 %v876
    %1032 = vmatprep.subr.bf16.mxu0 0
    %1033 = vmatpush1.bf16.xpose.msra.mxu0 %v877
    %1034 = vmatprep.subr.bf16.mxu0 0
    %1035 = vmatpush1.bf16.xpose.msra.mxu0 %v878
    %1036 = vmatprep.subr.bf16.mxu0 0
    %1037 = vmatpush1.bf16.xpose.msra.mxu0 %v879
    %1038 = vmatprep.subr.bf16.mxu0 0
    %1039 = vmatpush1.bf16.xpose.msra.mxu0 %v880
    %1040 = vmatprep.subr.bf16.mxu0 0
    %1041 = vmatpush1.bf16.xpose.msra.mxu0 %v881
    %1042 = vmatprep.subr.bf16.mxu0 0
    %1043 = vmatpush1.bf16.xpose.msra.mxu0 %v882
    %1044 = vmatprep.subr.bf16.mxu0 0
    %1045 = vmatpush1.bf16.xpose.msra.mxu0 0
    %1046 = vmatprep.subr.bf16.mxu0 0
    %1047 = vmatpush1.bf16.xpose.msra.mxu0 0
    %1048 = vmatprep.subr.bf16.mxu0 0
    %1049 = vmatpush1.bf16.xpose.msra.mxu0 0
    %1050 = vmatprep.subr.bf16.mxu0 0
    %1051 = vmatpush1.bf16.xpose.msra.mxu0 0
    %1052 = vmatprep.subr.bf16.mxu0 0
    %1053 = vmatpush1.bf16.xpose.msra.mxu0 0
    %1054 = vmatprep.subr.bf16.mxu0 0
    %1055 = vmatpush1.bf16.xpose.msra.mxu0 0
    %1056 = vmatprep.subr.bf16.mxu0 0
    %1057 = vmatpush1.bf16.xpose.msra.mxu0 0
    %1058 = vmatprep.subr.bf16.mxu0 0
    %1059 = vmatpush1.bf16.xpose.msra.mxu0 0
    %1060 = vmatprep.mubr.bf16.mxu0 0
    %1061 = vmatmul.mubr.bf16.gmra.mrb[0].mxu0 %v25
    %v1062 = vpop.f32.mrb[0].mxu0
    %v1063 = vadd.f32 %v1023, %v1062
    %v1064 = vpop.f32.mrb[0].mxu0
    %v1065 = vpop.f32.mrb[0].mxu0
    %v1066 = vpop.f32.mrb[0].mxu0
    %1067 = vdwg.mxu0
    %v1068 = vpack.c.bf16 %v1063, %v1063
    %v1069 = vld [vmem:[%s5 + $0x1] sm:$0x1]
    %v1071 = vlaneseq
    %v1072 = vshrl.u32 %v1071, 7
    %v1073 = vsub.s32 0, %v1072
    %v1074 = vrot.slane %v1069, %v1073
    %v1092 = vunpack.c.l.b16 %v972
    %v1093 = vunpack.c.l.b16 %v973
    %v1094 = vunpack.c.l.b16 %v974
    %v1095 = vunpack.c.l.b16 %v975
    %v1096 = vunpack.c.l.b16 %v976
    %v1097 = vunpack.c.l.b16 %v977
    %v1098 = vunpack.c.l.b16 %v978
    %v1099 = vunpack.c.l.b16 %v979
    %v1100 = vunpack.c.l.b16 %v980
    %v1101 = vunpack.c.l.b16 %v981
    %v1102 = vunpack.c.l.b16 %v982
    %v1103 = vunpack.c.l.b16 %v983
    %v1104 = vunpack.c.l.b16 %v984
    %v1105 = vunpack.c.l.b16 %v985
    %v1106 = vunpack.c.l.b16 %v986
    %v1107 = vunpack.c.l.b16 %v987
    %v1108 = vpack.c.b16 %v1093, %v1092
    %v1109 = vpack.c.b16 %v1095, %v1094
    %v1110 = vpack.c.b16 %v1097, %v1096
    %v1111 = vpack.c.b16 %v1099, %v1098
    %v1112 = vpack.c.b16 %v1101, %v1100
    %v1113 = vpack.c.b16 %v1103, %v1102
    %v1114 = vpack.c.b16 %v1105, %v1104
    %v1115 = vpack.c.b16 %v1107, %v1106
    %1124 = vmatprep.subr.bf16.mxu0 0
    %1125 = vmatpush1.bf16.xpose.msra.mxu0 %v1108
    %1126 = vmatprep.subr.bf16.mxu0 0
    %1127 = vmatpush1.bf16.xpose.msra.mxu0 %v1109
    %1128 = vmatprep.subr.bf16.mxu0 0
    %1129 = vmatpush1.bf16.xpose.msra.mxu0 %v1110
    %1130 = vmatprep.subr.bf16.mxu0 0
    %1131 = vmatpush1.bf16.xpose.msra.mxu0 %v1111
    %1132 = vmatprep.subr.bf16.mxu0 0
    %1133 = vmatpush1.bf16.xpose.msra.mxu0 %v1112
    %1134 = vmatprep.subr.bf16.mxu0 0
    %1135 = vmatpush1.bf16.xpose.msra.mxu0 %v1113
    %1136 = vmatprep.subr.bf16.mxu0 0
    %1137 = vmatpush1.bf16.xpose.msra.mxu0 %v1114
    %1138 = vmatprep.subr.bf16.mxu0 0
    %1139 = vmatpush1.bf16.xpose.msra.mxu0 %v1115
    %1140 = vmatprep.subr.bf16.mxu0 0
    %1141 = vmatpush1.bf16.xpose.msra.mxu0 0
    %1142 = vmatprep.subr.bf16.mxu0 0
    %1143 = vmatpush1.bf16.xpose.msra.mxu0 0
    %1144 = vmatprep.subr.bf16.mxu0 0
    %1145 = vmatpush1.bf16.xpose.msra.mxu0 0
    %1146 = vmatprep.subr.bf16.mxu0 0
    %1147 = vmatpush1.bf16.xpose.msra.mxu0 0
    %1148 = vmatprep.subr.bf16.mxu0 0
    %1149 = vmatpush1.bf16.xpose.msra.mxu0 0
    %1150 = vmatprep.subr.bf16.mxu0 0
    %1151 = vmatpush1.bf16.xpose.msra.mxu0 0
    %1152 = vmatprep.subr.bf16.mxu0 0
    %1153 = vmatpush1.bf16.xpose.msra.mxu0 0
    %1154 = vmatprep.subr.bf16.mxu0 0
    %1155 = vmatpush1.bf16.xpose.msra.mxu0 0
    %1156 = vmatprep.mubr.bf16.mxu0 0
    %1157 = vmatmul.mubr.bf16.gmra.mrb[0].mxu0 %v1068
    %v1158 = vpop.f32.mrb[0].mxu0
    %v1159 = vadd.f32 %v1074, %v1158
    %v1160 = vpop.f32.mrb[0].mxu0
    %v1161 = vpop.f32.mrb[0].mxu0
    %v1162 = vpop.f32.mrb[0].mxu0
    %1163 = vdwg.mxu0
    %v1164 = vpack.c.bf16 %v1159, %v1159
    %1165 = vst [vmem:[#allocation2 + $0x4] sm:$0xf] %v1164
    // Predicated region
    $region26: #{tpu_custom_call.1} parent=1 // pred_check
      _
    $region27: #{tpu_custom_call.1} parent=1 // pred_check_branch
      %1167 = sbr.rel (0) target = $region29
    $region28: #{tpu_custom_call.1} parent=1 // pred_region
      %s1169 = ssub.s32 128, 128
      %1170 = vsyncadd [#allocation3], %s1169
      %s1172 = sshll.u32 [#allocation2], 4
      %s1173 = int_to_ptr.vmem [resolvable:$true] %s1172
      %1175 = dma.vmem_to_hbm [thread:$0]  %s1173, 128, %s6, [#allocation3]
    $region29: #{tpu_custom_call.1} parent=1 // pred_fallthru
      _
    // Predicated region
    $region30: #{tpu_custom_call.1} parent=1 // pred_check
      _
    $region31: #{tpu_custom_call.1} parent=1 // pred_check_branch
      %1177 = sbr.rel (0) target = $region33
    $region32: #{tpu_custom_call.1} parent=1 // pred_region
      %1178 = dma.done [#allocation3], 128
    $region33: #{tpu_custom_call.1} parent=1 // pred_fallthru
      _
    %1179 = vsyncpa [#allocation3], 1

</llo_original>
